<compile_context>
chip_gen: v7x
topology: tpu7x:2x2x1
jax: 0.10.0
libtpu: 0.0.40
codegen_flags: <defaults>
</compile_context>

<pallas_src>
import functools
import math

import jax
import jax.numpy as jnp
from jax import lax
from jax.experimental import pallas as pl
from jax.experimental.pallas import tpu as pltpu


def _flash_fwd_kernel(q_ref, k_ref, v_ref, o_ref, qs_sc, m_sc, l_sc, acc_sc,
                      *, scale, num_packed, head_dim):
    """Online-softmax flash attention over one (tq, L) Q block.

    Block layout: L = num_packed * head_dim lanes; packed head p occupies
    lanes [p*D, (p+1)*D).  Scratch m/l/acc carry one slab per packed head.
    """
    kv_step = pl.program_id(3)
    P, D = num_packed, head_dim

    @pl.when(kv_step == 0)
    def _init():
        # Scale Q once per Q tile (hoisted out of the KV loop); keep it in the
        # input dtype so the MXU sees low-precision operands.
        qs_sc[...] = (q_ref[...].astype(jnp.float32) * scale).astype(qs_sc.dtype)
        m_sc[...] = jnp.full_like(m_sc, -jnp.inf)
        l_sc[...] = jnp.zeros_like(l_sc)
        acc_sc[...] = jnp.zeros_like(acc_sc)

    k = k_ref[...]                    # (tk, L) low precision
    v = v_ref[...]                    # (tk, L) low precision

    for p in range(P):                # static unroll over packed heads
        sl = slice(p * D, (p + 1) * D)
        q_p = qs_sc[:, sl]            # (tq, D) already scaled
        # QK^T without materializing K^T: contract dim 1 of both operands.
        s = lax.dot_general(
            q_p, k[:, sl],
            dimension_numbers=(((1,), (1,)), ((), ())),
            preferred_element_type=jnp.float32,
        )                             # (tq, tk) f32

        m_prev = m_sc[p]                                    # (tq, 1)
        m_new = jnp.maximum(m_prev, s.max(axis=-1, keepdims=True))
        alpha = jnp.exp(m_prev - m_new)
        probs = jnp.exp(s - m_new)                          # (tq, tk) f32

        l_sc[p] = alpha * l_sc[p] + probs.sum(axis=-1, keepdims=True)
        acc_sc[p] = alpha * acc_sc[p] + jnp.dot(
            probs.astype(v.dtype), v[:, sl], preferred_element_type=jnp.float32)
        m_sc[p] = m_new

    @pl.when(kv_step == pl.num_programs(3) - 1)
    def _finalize():
        for p in range(P):
            inv_l = pl.reciprocal(l_sc[p], approx=True)
            o_ref[:, p * D:(p + 1) * D] = (acc_sc[p] * inv_l).astype(o_ref.dtype)


def _pick_tile(dim, target):
    """Largest legal tile <= target: the full dim, or a divisor of dim that is
    a multiple of 16 (preferred: bf16 sublane packing) or 8 (BlockSpec rule).
    Never drops tail rows/keys."""
    if dim <= target:
        return dim
    for mult in (16, 8):
        t = (min(target, dim) // mult) * mult
        while t >= mult:
            if dim % t == 0:
                return t
            t -= mult
    return dim  # TODO(synk): pad-and-mask path for awkward (prime-ish) extents


def _tile_sizes(T, S, L, P, D, q_bytes, out_bytes):
    """Pick (tq, tk) targeting big tiles but keeping the per-step VMEM
    footprint comfortably under the default scoped VMEM limit."""
    budget = 24 * 1024 * 1024
    tq = tk = None
    for tq_t, tk_t in ((512, 1024), (256, 512), (128, 256), (64, 128)):
        tq = _pick_tile(T, tq_t)
        tk = _pick_tile(S, tk_t)
        footprint = (
            2 * tq * L * q_bytes          # double-buffered Q block
            + 4 * tk * L * q_bytes        # double-buffered K and V blocks
            + 2 * tq * L * out_bytes      # double-buffered output block
            + tq * L * q_bytes            # scaled-Q scratch
            + P * tq * (D + 2) * 4        # acc / m / l scratch
            + 3 * tq * tk * 4             # score / probs temporaries (estimate)
        )
        if footprint <= budget:
            return tq, tk
    return tq, tk  # best effort


def flash_attention(q, kv, softmax_scale=None, causal=False,
                    key_padding_mask=None, out_dtype=jnp.float32):
    """Mirrors FlashAttention.forward (key_padding_mask=None path, eval mode).

    q:  (B, T, H, D) bf16/fp16
    kv: (B, S, 2, H, D) bf16/fp16
    returns: (output (B, T, H, D) out_dtype, None)
    """
    assert q.dtype in (jnp.bfloat16, jnp.float16) and kv.dtype == q.dtype
    assert not causal                 # TODO(synk): causal masking not needed for the default call path
    assert key_padding_mask is None   # TODO(synk): variable-length unpadded path not implemented

    B, T, H, D = q.shape
    S = kv.shape[1]
    assert kv.shape == (B, S, 2, H, D)

    scale = softmax_scale if softmax_scale is not None else 1.0 / math.sqrt(D)

    # Lane packing: put P consecutive heads side-by-side in the lane dim so
    # blocks are as lane-dense as possible (P*D <= 128, P | H).
    if D % 128 == 0 or D > 128:
        P = 1
    else:
        P = max(1, min(H, 128 // D))
        while H % P != 0:
            P -= 1
    Hg = H // P
    L = P * D

    q_bytes = jnp.dtype(q.dtype).itemsize
    out_bytes = jnp.dtype(out_dtype).itemsize
    tq, tk = _tile_sizes(T, S, L, P, D, q_bytes, out_bytes)
    grid = (B, Hg, pl.cdiv(T, tq), pl.cdiv(S, tk))  # exact: tiles divide T and S

    # One-time repack of K / V to (B, Hg, S, L): every (tk, L) block becomes a
    # single contiguous HBM transfer (KV is re-read T/tq times).
    k4 = jnp.transpose(kv[:, :, 0].reshape(B, S, Hg, L), (0, 2, 1, 3))
    v4 = jnp.transpose(kv[:, :, 1].reshape(B, S, Hg, L), (0, 2, 1, 3))
    kv_spec = pl.BlockSpec((None, None, tk, L), lambda b, h, i, j: (b, h, j, 0))

    kernel = functools.partial(_flash_fwd_kernel, scale=scale,
                               num_packed=P, head_dim=D)
    scratch = [
        pltpu.VMEM((tq, L), q.dtype),         # scaled Q (hoisted)
        pltpu.VMEM((P, tq, 1), jnp.float32),  # running max per packed head
        pltpu.VMEM((P, tq, 1), jnp.float32),  # running denom per packed head
        pltpu.VMEM((P, tq, D), jnp.float32),  # output accumulator per packed head
    ]
    cparams = pltpu.CompilerParams(
        dimension_semantics=("parallel", "parallel", "parallel", "arbitrary"))

    lane_dense_qo = (L % 128 == 0) or (Hg == 1)
    if lane_dense_qo:
        # Q / output keep their natural (B, T, H*D) layout (contiguous reshape
        # only, read/written once); the head group is selected via index_map.
        q2 = q.reshape(B, T, Hg * L)
        out = pl.pallas_call(
            kernel,
            out_shape=jax.ShapeDtypeStruct((B, T, Hg * L), out_dtype),
            grid_spec=pltpu.PrefetchScalarGridSpec(
                num_scalar_prefetch=0,
                grid=grid,
                in_specs=[
                    pl.BlockSpec((None, tq, L), lambda b, h, i, j: (b, i, h)),
                    kv_spec,
                    kv_spec,
                ],
                out_specs=pl.BlockSpec((None, tq, L), lambda b, h, i, j: (b, i, h)),
                scratch_shapes=scratch,
            ),
            compiler_params=cparams,
        )(q2, k4, v4)
        out = out.reshape(B, T, H, D)
    else:
        # Awkward head dims (L not a multiple of 128 with multiple head
        # groups): transpose Q / output so the block spans the full lane dim.
        q4 = jnp.transpose(q.reshape(B, T, Hg, L), (0, 2, 1, 3))  # (B, Hg, T, L)
        out = pl.pallas_call(
            kernel,
            out_shape=jax.ShapeDtypeStruct((B, Hg, T, L), out_dtype),
            grid_spec=pltpu.PrefetchScalarGridSpec(
                num_scalar_prefetch=0,
                grid=grid,
                in_specs=[
                    pl.BlockSpec((None, None, tq, L), lambda b, h, i, j: (b, h, i, 0)),
                    kv_spec,
                    kv_spec,
                ],
                out_specs=pl.BlockSpec((None, None, tq, L),
                                       lambda b, h, i, j: (b, h, i, 0)),
                scratch_shapes=scratch,
            ),
            compiler_params=cparams,
        )(q4, k4, v4)
        out = jnp.transpose(out, (0, 2, 1, 3)).reshape(B, T, H, D)

    return out, None


def _reference(q, kv, scale):
    qf = q.astype(jnp.float32)
    kf = kv[:, :, 0].astype(jnp.float32)
    vf = kv[:, :, 1].astype(jnp.float32)
    s = jnp.einsum("bthd,bshd->bhts", qf, kf) * scale
    p = jax.nn.softmax(s, axis=-1)
    return jnp.einsum("bhts,bshd->bthd", p, vf)


def _run_case(key, B, T, S, H, D):
    k1, k2 = jax.random.split(key)
    q = jax.random.normal(k1, (B, T, H, D), dtype=jnp.float32).astype(jnp.bfloat16)
    kv = jax.random.normal(k2, (B, S, 2, H, D), dtype=jnp.float32).astype(jnp.bfloat16)
    out, _ = flash_attention(q, kv)
    out = jax.block_until_ready(out)
    ref = _reference(q, kv, 1.0 / math.sqrt(D))
    assert out.shape == (B, T, H, D) and out.dtype == jnp.float32
    assert jnp.allclose(out, ref, atol=3e-2, rtol=3e-2), \
        f"mismatch vs reference for shape B={B} T={T} S={S} H={H} D={D}"


if __name__ == "__main__":
    key = jax.random.PRNGKey(0)
    k1, k2, k3 = jax.random.split(key, 3)

    # Case 1: D = 32 -> lane-packed path (P = 2, L = 64), reshape-only Q/O layout.
    _run_case(k1, B=2, T=16, S=32, H=2, D=32)

    # Case 2: D = 128 -> lane-dense main path (P = 1), contiguous KV repack.
    _run_case(k2, B=1, T=16, S=16, H=2, D=128)

    # Case 3: D = 96 -> awkward head dim, transposed Q/O fallback path.
    _run_case(k3, B=1, T=16, S=16, H=2, D=96)

    print("KERNEL_OK")
</pallas_src>

<mosaic_0001>
module attributes {stable_mosaic.version = 11 : i64} {
  func.func @_flash_fwd_kernel(%arg0: i32, %arg1: i32, %arg2: i32, %arg3: i32, %arg4: memref<1x16x64xbf16, #tpu.memory_space<vmem>>, %arg5: memref<1x1x32x64xbf16, #tpu.memory_space<vmem>>, %arg6: memref<1x1x32x64xbf16, #tpu.memory_space<vmem>>, %arg7: memref<1x16x64xf32, #tpu.memory_space<vmem>>, %arg8: memref<16x64xbf16, #tpu.memory_space<vmem>>, %arg9: memref<2x16x1xf32, #tpu.memory_space<vmem>>, %arg10: memref<2x16x1xf32, #tpu.memory_space<vmem>>, %arg11: memref<2x16x32xf32, #tpu.memory_space<vmem>>) attributes {dimension_semantics = [#tpu.dimension_semantics<parallel>, #tpu.dimension_semantics<parallel>, #tpu.dimension_semantics<parallel>, #tpu.dimension_semantics<arbitrary>], iteration_bounds = array<i64: 2, 1, 1, 1>, scalar_prefetch = 0 : i64, scratch_operands = 4 : i64, tpu.core_type = #tpu.core_type<tc>, window_params = [{transform_indices = @transform_0, window_bounds = array<i64: 1, 16, 64>}, {transform_indices = @transform_1, window_bounds = array<i64: 1, 1, 32, 64>}, {transform_indices = @transform_2, window_bounds = array<i64: 1, 1, 32, 64>}, {transform_indices = @transform_3, window_bounds = array<i64: 1, 16, 64>}]} {
    %c0_i32 = arith.constant 0 : i32
    %0 = arith.cmpi eq, %arg3, %c0_i32 : i32
    %1 = arith.extui %0 : i1 to i32
    %c0_i32_0 = arith.constant 0 : i32
    %2 = arith.cmpi ne, %1, %c0_i32_0 : i32
    scf.if %2 {
      %c0_55 = arith.constant 0 : index
      %c0_56 = arith.constant 0 : index
      %c0_57 = arith.constant 0 : index
      %82 = vector.load %arg4[%c0_55, %c0_56, %c0_57] : memref<1x16x64xbf16, #tpu.memory_space<vmem>>, vector<1x16x64xbf16>
      %83 = vector.shape_cast %82 : vector<1x16x64xbf16> to vector<16x64xbf16>
      %84 = arith.extf %83 : vector<16x64xbf16> to vector<16x64xf32>
      %cst_58 = arith.constant 0.176776692 : f32
      %85 = vector.broadcast %cst_58 : f32 to vector<16x64xf32>
      %86 = arith.mulf %84, %85 : vector<16x64xf32>
      %87 = arith.truncf %86 : vector<16x64xf32> to vector<16x64xbf16>
      %c0_59 = arith.constant 0 : index
      %c0_60 = arith.constant 0 : index
      %88 = vector.load %arg8[%c0_59, %c0_60] : memref<16x64xbf16, #tpu.memory_space<vmem>>, vector<16x64xbf16>
      tpu.vector_store %arg8[%c0_59, %c0_60], %87 {strides = array<i32>} : memref<16x64xbf16, #tpu.memory_space<vmem>>, vector<16x64xbf16>,
      %cst_61 = arith.constant 0xFF800000 : f32
      %89 = vector.broadcast %cst_61 : f32 to vector<2x16x1xf32>
      %c0_62 = arith.constant 0 : index
      %c0_63 = arith.constant 0 : index
      %c0_64 = arith.constant 0 : index
      %90 = vector.load %arg9[%c0_62, %c0_63, %c0_64] : memref<2x16x1xf32, #tpu.memory_space<vmem>>, vector<2x16x1xf32>
      tpu.vector_store %arg9[%c0_62, %c0_63, %c0_64], %89 {strides = array<i32>} : memref<2x16x1xf32, #tpu.memory_space<vmem>>, vector<2x16x1xf32>,
      %cst_65 = arith.constant 0.000000e+00 : f32
      %91 = vector.broadcast %cst_65 : f32 to vector<2x16x1xf32>
      %c0_66 = arith.constant 0 : index
      %c0_67 = arith.constant 0 : index
      %c0_68 = arith.constant 0 : index
      %92 = vector.load %arg10[%c0_66, %c0_67, %c0_68] : memref<2x16x1xf32, #tpu.memory_space<vmem>>, vector<2x16x1xf32>
      tpu.vector_store %arg10[%c0_66, %c0_67, %c0_68], %91 {strides = array<i32>} : memref<2x16x1xf32, #tpu.memory_space<vmem>>, vector<2x16x1xf32>,
      %cst_69 = arith.constant 0.000000e+00 : f32
      %93 = vector.broadcast %cst_69 : f32 to vector<2x16x32xf32>
      %c0_70 = arith.constant 0 : index
      %c0_71 = arith.constant 0 : index
      %c0_72 = arith.constant 0 : index
      %94 = vector.load %arg11[%c0_70, %c0_71, %c0_72] : memref<2x16x32xf32, #tpu.memory_space<vmem>>, vector<2x16x32xf32>
      tpu.vector_store %arg11[%c0_70, %c0_71, %c0_72], %93 {strides = array<i32>} : memref<2x16x32xf32, #tpu.memory_space<vmem>>, vector<2x16x32xf32>,
    } else {
    }
    %c0 = arith.constant 0 : index
    %c0_1 = arith.constant 0 : index
    %c0_2 = arith.constant 0 : index
    %c0_3 = arith.constant 0 : index
    %3 = vector.load %arg5[%c0, %c0_1, %c0_2, %c0_3] : memref<1x1x32x64xbf16, #tpu.memory_space<vmem>>, vector<1x1x32x64xbf16>
    %4 = vector.shape_cast %3 : vector<1x1x32x64xbf16> to vector<32x64xbf16>
    %c0_4 = arith.constant 0 : index
    %c0_5 = arith.constant 0 : index
    %c0_6 = arith.constant 0 : index
    %c0_7 = arith.constant 0 : index
    %5 = vector.load %arg6[%c0_4, %c0_5, %c0_6, %c0_7] : memref<1x1x32x64xbf16, #tpu.memory_space<vmem>>, vector<1x1x32x64xbf16>
    %6 = vector.shape_cast %5 : vector<1x1x32x64xbf16> to vector<32x64xbf16>
    %c0_8 = arith.constant 0 : index
    %c0_9 = arith.constant 0 : index
    %7 = vector.load %arg8[%c0_8, %c0_9] : memref<16x64xbf16, #tpu.memory_space<vmem>>, vector<16x32xbf16>
    %8 = vector.extract_strided_slice %4 {offsets = [0, 0], sizes = [32, 32], strides = [1, 1]} : vector<32x64xbf16> to vector<32x32xbf16>
    %cst = arith.constant dense<0.000000e+00> : vector<16x32xf32>
    %9 = tpu.matmul %7, %8, %cst {dimension_numbers = #tpu.dot_dimension_numbers<[1], [1], [0], [0], [0, 0, 1, 0], [], []>} : vector<16x32xbf16>, vector<32x32xbf16>, vector<16x32xf32> -> vector<16x32xf32>
    %c0_10 = arith.constant 0 : index
    %c0_11 = arith.constant 0 : index
    %c0_12 = arith.constant 0 : index
    %10 = vector.load %arg9[%c0_10, %c0_11, %c0_12] : memref<2x16x1xf32, #tpu.memory_space<vmem>>, vector<1x16x1xf32>
    %11 = vector.shape_cast %10 : vector<1x16x1xf32> to vector<16x1xf32>
    %cst_13 = arith.constant dense<0xFF800000> : vector<16xf32>
    %12 = vector.multi_reduction <maximumf>, %9, %cst_13 [1] : vector<16x32xf32> to vector<16xf32>
    %13 = vector.shape_cast %12 : vector<16xf32> to vector<16x1xf32>
    %14 = arith.maximumf %11, %13 : vector<16x1xf32>
    %15 = arith.subf %11, %14 : vector<16x1xf32>
    %16 = math.exp %15 : vector<16x1xf32>
    %17 = vector.broadcast %14 : vector<16x1xf32> to vector<16x32xf32>
    %18 = arith.subf %9, %17 : vector<16x32xf32>
    %19 = math.exp %18 : vector<16x32xf32>
    %c0_14 = arith.constant 0 : index
    %c0_15 = arith.constant 0 : index
    %c0_16 = arith.constant 0 : index
    %20 = vector.load %arg10[%c0_14, %c0_15, %c0_16] : memref<2x16x1xf32, #tpu.memory_space<vmem>>, vector<1x16x1xf32>
    %21 = vector.shape_cast %20 : vector<1x16x1xf32> to vector<16x1xf32>
    %22 = arith.mulf %16, %21 : vector<16x1xf32>
    %cst_17 = arith.constant dense<0.000000e+00> : vector<16xf32>
    %23 = vector.multi_reduction <add>, %19, %cst_17 [1] : vector<16x32xf32> to vector<16xf32>
    %24 = vector.shape_cast %23 : vector<16xf32> to vector<16x1xf32>
    %25 = arith.addf %22, %24 : vector<16x1xf32>
    %c0_18 = arith.constant 0 : index
    %c0_19 = arith.constant 0 : index
    %c0_20 = arith.constant 0 : index
    %26 = vector.load %arg10[%c0_18, %c0_19, %c0_20] : memref<2x16x1xf32, #tpu.memory_space<vmem>>, vector<1x16x1xf32>
    %27 = vector.shape_cast %26 : vector<1x16x1xf32> to vector<16x1xf32>
    %28 = vector.shape_cast %25 : vector<16x1xf32> to vector<1x16x1xf32>
    tpu.vector_store %arg10[%c0_18, %c0_19, %c0_20], %28 {strides = array<i32>} : memref<2x16x1xf32, #tpu.memory_space<vmem>>, vector<1x16x1xf32>,
    %c0_21 = arith.constant 0 : index
    %c0_22 = arith.constant 0 : index
    %c0_23 = arith.constant 0 : index
    %29 = vector.load %arg11[%c0_21, %c0_22, %c0_23] : memref<2x16x32xf32, #tpu.memory_space<vmem>>, vector<1x16x32xf32>
    %30 = vector.shape_cast %29 : vector<1x16x32xf32> to vector<16x32xf32>
    %31 = vector.broadcast %16 : vector<16x1xf32> to vector<16x32xf32>
    %32 = arith.mulf %31, %30 : vector<16x32xf32>
    %33 = arith.truncf %19 : vector<16x32xf32> to vector<16x32xbf16>
    %34 = vector.extract_strided_slice %6 {offsets = [0, 0], sizes = [32, 32], strides = [1, 1]} : vector<32x64xbf16> to vector<32x32xbf16>
    %cst_24 = arith.constant dense<0.000000e+00> : vector<16x32xf32>
    %35 = tpu.matmul %33, %34, %cst_24 {dimension_numbers = #tpu.dot_dimension_numbers<[1], [0], [0], [1], [0, 0, 1, 1], [], []>} : vector<16x32xbf16>, vector<32x32xbf16>, vector<16x32xf32> -> vector<16x32xf32>
    %36 = arith.addf %32, %35 : vector<16x32xf32>
    %c0_25 = arith.constant 0 : index
    %c0_26 = arith.constant 0 : index
    %c0_27 = arith.constant 0 : index
    %37 = vector.load %arg11[%c0_25, %c0_26, %c0_27] : memref<2x16x32xf32, #tpu.memory_space<vmem>>, vector<1x16x32xf32>
    %38 = vector.shape_cast %37 : vector<1x16x32xf32> to vector<16x32xf32>
    %39 = vector.shape_cast %36 : vector<16x32xf32> to vector<1x16x32xf32>
    tpu.vector_store %arg11[%c0_25, %c0_26, %c0_27], %39 {strides = array<i32>} : memref<2x16x32xf32, #tpu.memory_space<vmem>>, vector<1x16x32xf32>,
    %c0_28 = arith.constant 0 : index
    %c0_29 = arith.constant 0 : index
    %c0_30 = arith.constant 0 : index
    %40 = vector.load %arg9[%c0_28, %c0_29, %c0_30] : memref<2x16x1xf32, #tpu.memory_space<vmem>>, vector<1x16x1xf32>
    %41 = vector.shape_cast %40 : vector<1x16x1xf32> to vector<16x1xf32>
    %42 = vector.shape_cast %14 : vector<16x1xf32> to vector<1x16x1xf32>
    tpu.vector_store %arg9[%c0_28, %c0_29, %c0_30], %42 {strides = array<i32>} : memref<2x16x1xf32, #tpu.memory_space<vmem>>, vector<1x16x1xf32>,
    %c0_31 = arith.constant 0 : index
    %c32 = arith.constant 32 : index
    %43 = vector.load %arg8[%c0_31, %c32] : memref<16x64xbf16, #tpu.memory_space<vmem>>, vector<16x32xbf16>
    %44 = vector.extract_strided_slice %4 {offsets = [0, 32], sizes = [32, 32], strides = [1, 1]} : vector<32x64xbf16> to vector<32x32xbf16>
    %cst_32 = arith.constant dense<0.000000e+00> : vector<16x32xf32>
    %45 = tpu.matmul %43, %44, %cst_32 {dimension_numbers = #tpu.dot_dimension_numbers<[1], [1], [0], [0], [0, 0, 1, 0], [], []>} : vector<16x32xbf16>, vector<32x32xbf16>, vector<16x32xf32> -> vector<16x32xf32>
    %c1 = arith.constant 1 : index
    %c0_33 = arith.constant 0 : index
    %c0_34 = arith.constant 0 : index
    %46 = vector.load %arg9[%c1, %c0_33, %c0_34] : memref<2x16x1xf32, #tpu.memory_space<vmem>>, vector<1x16x1xf32>
    %47 = vector.shape_cast %46 : vector<1x16x1xf32> to vector<16x1xf32>
    %cst_35 = arith.constant dense<0xFF800000> : vector<16xf32>
    %48 = vector.multi_reduction <maximumf>, %45, %cst_35 [1] : vector<16x32xf32> to vector<16xf32>
    %49 = vector.shape_cast %48 : vector<16xf32> to vector<16x1xf32>
    %50 = arith.maximumf %47, %49 : vector<16x1xf32>
    %51 = arith.subf %47, %50 : vector<16x1xf32>
    %52 = math.exp %51 : vector<16x1xf32>
    %53 = vector.broadcast %50 : vector<16x1xf32> to vector<16x32xf32>
    %54 = arith.subf %45, %53 : vector<16x32xf32>
    %55 = math.exp %54 : vector<16x32xf32>
    %c1_36 = arith.constant 1 : index
    %c0_37 = arith.constant 0 : index
    %c0_38 = arith.constant 0 : index
    %56 = vector.load %arg10[%c1_36, %c0_37, %c0_38] : memref<2x16x1xf32, #tpu.memory_space<vmem>>, vector<1x16x1xf32>
    %57 = vector.shape_cast %56 : vector<1x16x1xf32> to vector<16x1xf32>
    %58 = arith.mulf %52, %57 : vector<16x1xf32>
    %cst_39 = arith.constant dense<0.000000e+00> : vector<16xf32>
    %59 = vector.multi_reduction <add>, %55, %cst_39 [1] : vector<16x32xf32> to vector<16xf32>
    %60 = vector.shape_cast %59 : vector<16xf32> to vector<16x1xf32>
    %61 = arith.addf %58, %60 : vector<16x1xf32>
    %c1_40 = arith.constant 1 : index
    %c0_41 = arith.constant 0 : index
    %c0_42 = arith.constant 0 : index
    %62 = vector.load %arg10[%c1_40, %c0_41, %c0_42] : memref<2x16x1xf32, #tpu.memory_space<vmem>>, vector<1x16x1xf32>
    %63 = vector.shape_cast %62 : vector<1x16x1xf32> to vector<16x1xf32>
    %64 = vector.shape_cast %61 : vector<16x1xf32> to vector<1x16x1xf32>
    tpu.vector_store %arg10[%c1_40, %c0_41, %c0_42], %64 {strides = array<i32>} : memref<2x16x1xf32, #tpu.memory_space<vmem>>, vector<1x16x1xf32>,
    %c1_43 = arith.constant 1 : index
    %c0_44 = arith.constant 0 : index
    %c0_45 = arith.constant 0 : index
    %65 = vector.load %arg11[%c1_43, %c0_44, %c0_45] : memref<2x16x32xf32, #tpu.memory_space<vmem>>, vector<1x16x32xf32>
    %66 = vector.shape_cast %65 : vector<1x16x32xf32> to vector<16x32xf32>
    %67 = vector.broadcast %52 : vector<16x1xf32> to vector<16x32xf32>
    %68 = arith.mulf %67, %66 : vector<16x32xf32>
    %69 = arith.truncf %55 : vector<16x32xf32> to vector<16x32xbf16>
    %70 = vector.extract_strided_slice %6 {offsets = [0, 32], sizes = [32, 32], strides = [1, 1]} : vector<32x64xbf16> to vector<32x32xbf16>
    %cst_46 = arith.constant dense<0.000000e+00> : vector<16x32xf32>
    %71 = tpu.matmul %69, %70, %cst_46 {dimension_numbers = #tpu.dot_dimension_numbers<[1], [0], [0], [1], [0, 0, 1, 1], [], []>} : vector<16x32xbf16>, vector<32x32xbf16>, vector<16x32xf32> -> vector<16x32xf32>
    %72 = arith.addf %68, %71 : vector<16x32xf32>
    %c1_47 = arith.constant 1 : index
    %c0_48 = arith.constant 0 : index
    %c0_49 = arith.constant 0 : index
    %73 = vector.load %arg11[%c1_47, %c0_48, %c0_49] : memref<2x16x32xf32, #tpu.memory_space<vmem>>, vector<1x16x32xf32>
    %74 = vector.shape_cast %73 : vector<1x16x32xf32> to vector<16x32xf32>
    %75 = vector.shape_cast %72 : vector<16x32xf32> to vector<1x16x32xf32>
    tpu.vector_store %arg11[%c1_47, %c0_48, %c0_49], %75 {strides = array<i32>} : memref<2x16x32xf32, #tpu.memory_space<vmem>>, vector<1x16x32xf32>,
    %c1_50 = arith.constant 1 : index
    %c0_51 = arith.constant 0 : index
    %c0_52 = arith.constant 0 : index
    %76 = vector.load %arg9[%c1_50, %c0_51, %c0_52] : memref<2x16x1xf32, #tpu.memory_space<vmem>>, vector<1x16x1xf32>
    %77 = vector.shape_cast %76 : vector<1x16x1xf32> to vector<16x1xf32>
    %78 = vector.shape_cast %50 : vector<16x1xf32> to vector<1x16x1xf32>
    tpu.vector_store %arg9[%c1_50, %c0_51, %c0_52], %78 {strides = array<i32>} : memref<2x16x1xf32, #tpu.memory_space<vmem>>, vector<1x16x1xf32>,
    %c0_i32_53 = arith.constant 0 : i32
    %79 = arith.cmpi eq, %arg3, %c0_i32_53 : i32
    %80 = arith.extui %79 : i1 to i32
    %c0_i32_54 = arith.constant 0 : i32
    %81 = arith.cmpi ne, %80, %c0_i32_54 : i32
    scf.if %81 {
      %c0_55 = arith.constant 0 : index
      %c0_56 = arith.constant 0 : index
      %c0_57 = arith.constant 0 : index
      %82 = vector.load %arg10[%c0_55, %c0_56, %c0_57] : memref<2x16x1xf32, #tpu.memory_space<vmem>>, vector<1x16x1xf32>
      %83 = vector.shape_cast %82 : vector<1x16x1xf32> to vector<16x1xf32>
      %84 = tpu.reciprocal %83 {approx = true} : vector<16x1xf32> -> vector<16x1xf32>
      %c0_58 = arith.constant 0 : index
      %c0_59 = arith.constant 0 : index
      %c0_60 = arith.constant 0 : index
      %85 = vector.load %arg11[%c0_58, %c0_59, %c0_60] : memref<2x16x32xf32, #tpu.memory_space<vmem>>, vector<1x16x32xf32>
      %86 = vector.shape_cast %85 : vector<1x16x32xf32> to vector<16x32xf32>
      %87 = vector.broadcast %84 : vector<16x1xf32> to vector<16x32xf32>
      %88 = arith.mulf %86, %87 : vector<16x32xf32>
      %c0_61 = arith.constant 0 : index
      %c0_62 = arith.constant 0 : index
      %c0_63 = arith.constant 0 : index
      %89 = vector.load %arg7[%c0_61, %c0_62, %c0_63] : memref<1x16x64xf32, #tpu.memory_space<vmem>>, vector<1x16x32xf32>
      %90 = vector.shape_cast %89 : vector<1x16x32xf32> to vector<16x32xf32>
      %91 = vector.shape_cast %88 : vector<16x32xf32> to vector<1x16x32xf32>
      tpu.vector_store %arg7[%c0_61, %c0_62, %c0_63], %91 {strides = array<i32>} : memref<1x16x64xf32, #tpu.memory_space<vmem>>, vector<1x16x32xf32>,
      %c1_64 = arith.constant 1 : index
      %c0_65 = arith.constant 0 : index
      %c0_66 = arith.constant 0 : index
      %92 = vector.load %arg10[%c1_64, %c0_65, %c0_66] : memref<2x16x1xf32, #tpu.memory_space<vmem>>, vector<1x16x1xf32>
      %93 = vector.shape_cast %92 : vector<1x16x1xf32> to vector<16x1xf32>
      %94 = tpu.reciprocal %93 {approx = true} : vector<16x1xf32> -> vector<16x1xf32>
      %c1_67 = arith.constant 1 : index
      %c0_68 = arith.constant 0 : index
      %c0_69 = arith.constant 0 : index
      %95 = vector.load %arg11[%c1_67, %c0_68, %c0_69] : memref<2x16x32xf32, #tpu.memory_space<vmem>>, vector<1x16x32xf32>
      %96 = vector.shape_cast %95 : vector<1x16x32xf32> to vector<16x32xf32>
      %97 = vector.broadcast %94 : vector<16x1xf32> to vector<16x32xf32>
      %98 = arith.mulf %96, %97 : vector<16x32xf32>
      %c0_70 = arith.constant 0 : index
      %c0_71 = arith.constant 0 : index
      %c32_72 = arith.constant 32 : index
      %99 = vector.load %arg7[%c0_70, %c0_71, %c32_72] : memref<1x16x64xf32, #tpu.memory_space<vmem>>, vector<1x16x32xf32>
      %100 = vector.shape_cast %99 : vector<1x16x32xf32> to vector<16x32xf32>
      %101 = vector.shape_cast %98 : vector<16x32xf32> to vector<1x16x32xf32>
      tpu.vector_store %arg7[%c0_70, %c0_71, %c32_72], %101 {strides = array<i32>} : memref<1x16x64xf32, #tpu.memory_space<vmem>>, vector<1x16x32xf32>,
    } else {
    }
    return
  }
  func.func @transform_0(%arg0: i32, %arg1: i32, %arg2: i32, %arg3: i32) -> (i32, i32, i32) {
    %c0_i32 = arith.constant 0 : i32
    return %arg0, %arg2, %arg1 : i32, i32, i32
  }
  func.func @transform_1(%arg0: i32, %arg1: i32, %arg2: i32, %arg3: i32) -> (i32, i32, i32, i32) {
    %c0_i32 = arith.constant 0 : i32
    %c0_i32_0 = arith.constant 0 : i32
    return %arg0, %arg1, %arg3, %c0_i32 : i32, i32, i32, i32
  }
  func.func @transform_2(%arg0: i32, %arg1: i32, %arg2: i32, %arg3: i32) -> (i32, i32, i32, i32) {
    %c0_i32 = arith.constant 0 : i32
    %c0_i32_0 = arith.constant 0 : i32
    return %arg0, %arg1, %arg3, %c0_i32 : i32, i32, i32, i32
  }
  func.func @transform_3(%arg0: i32, %arg1: i32, %arg2: i32, %arg3: i32) -> (i32, i32, i32) {
    %c0_i32 = arith.constant 0 : i32
    return %arg0, %arg2, %arg1 : i32, i32, i32
  }
}

</mosaic_0001>

<llo_original>
// kernel: tpu_custom_call.1
$region0: #{tpu_custom_call.1}
  #allocation0 [shape = 'u32[]', space=smem, size = 0x4, offset = 0x4, fixed_abs, tag = 'smem constant byte address 0x4 - core index']
  #allocation1 [shape = 'u32[144,128]{1,0:T(1,128)}', space=vmem, size = 0x12000, scoped, tag = 'internal scratch']
  #allocation2 [shape = 'bf16[16,64]{1,0:T(16,128)(2,1)}', space=vmem, size = 0x1000, scoped, tag = 'scratch operand']
  #allocation3 [shape = 'f32[2,16,1]{2,1,0:T(8,128)}', space=vmem, size = 0x4000, scoped, tag = 'scratch operand']
  #allocation4 [shape = 'f32[2,16,1]{2,1,0:T(8,128)}', space=vmem, size = 0x4000, scoped, tag = 'scratch operand']
  #allocation5 [shape = 'f32[2,16,32]{2,1,0:T(8,128)}', space=vmem, size = 0x4000, scoped, tag = 'scratch operand']
  %s0 = inlined_call_operand.hbm [shape: bf16[2,16,64], index: 0, kind: input, shape index: {}]
  %s1 = inlined_call_operand.hbm [shape: bf16[2,1,32,64], index: 1, kind: input, shape index: {}]
  %s2 = inlined_call_operand.hbm [shape: bf16[2,1,32,64], index: 2, kind: input, shape index: {}]
  %s3 = inlined_call_operand.hbm [shape: f32[2,16,64], index: 3, kind: output, shape index: {}]
  %s4 = sld [smem:[#allocation0]]
  $region65: #{tpu_custom_call.1} parent=0
    _
  %s6 = ssub.s32 1, %s4
  %s7 = scalar_select 0, %s6, %s4
  $region1: #{tpu_custom_call.1} parent=0
    #allocation6 [shape = 'u8[8192]{0}', space=vmem, size = 0x2000, scoped, tag = 'input window, operand 0']
    #allocation7 [shape = 's32[2]{0}', space=sflag, size = 0x8, scoped, tag = 'scoped memory for tpu_custom_call.1']
    #allocation8 [shape = 's32[2]{0}', space=sflag, size = 0x8, scoped, tag = 'scoped memory for tpu_custom_call.1']
    #allocation9 [shape = 'u8[16384]{0}', space=vmem, size = 0x4000, scoped, tag = 'input window, operand 1']
    #allocation10 [shape = 's32[2]{0}', space=sflag, size = 0x8, scoped, tag = 'scoped memory for tpu_custom_call.1']
    #allocation11 [shape = 'u8[16384]{0}', space=vmem, size = 0x4000, scoped, tag = 'input window, operand 2']
    #allocation12 [shape = 'u8[16384]{0}', space=vmem, size = 0x4000, scoped, tag = 'output window, operand 0']
    %8 = vsyncpa [#allocation7], 0
    %s9 = scalar_lea.sflag [#allocation7], 1
    %10 = vsyncpa %s9, 0
    %11 = vsyncpa [#allocation10], 0
    %s12 = scalar_lea.sflag [#allocation10], 1
    %13 = vsyncpa %s12, 0
    %14 = vsyncpa [#allocation8], 0
    %s15 = scalar_lea.sflag [#allocation8], 1
    %16 = vsyncpa %s15, 0
    loop: start=0, step=1, limit=4
    $region2: #{tpu_custom_call.1} parent=1 // loop_pre_header
      _
    $region3: #{tpu_custom_call.1} parent=1 // loop_header
      %s18 = sphi 0, %s22
      %p19 = scmp.ge.s32.totalorder %s18, 4
      %s25 = sphi 0, %s51
      %s26 = sphi 0, %s47
      %s27 = sphi 0, %s43
      %s28 = sphi 0, %s39
      %s29 = sphi 0, %s25
      %s30 = sphi 0, %s26
      %s31 = sphi 0, %s27
      %s32 = sphi 0, %s28
      %s33 = sphi 0, %s29
      %s34 = sphi 0, %s30
      %s35 = sphi 0, %s31
      %s36 = sphi 0, %s32
      %s58 = sphi 0, %s60
      %s61 = sphi 0, %s58
      %s62 = sphi 0, %s61
      %s78 = sphi 0, %s62
      %s88 = sphi 0, %s90
      %s91 = sphi 0, %s88
      %s92 = sphi 0, %s91
      %s108 = sphi 0, %s92
      %s118 = sphi 0, %s120
      %s121 = sphi 0, %s118
      %s122 = sphi 0, %s121
      %s138 = sphi 0, %s122
      %s148 = sphi 0, %s150
      %s151 = sphi 0, %s148
      %s152 = sphi 0, %s151
      %s168 = sphi 0, %s152
    $region4: #{tpu_custom_call.1} parent=1 // loop_header_branch
      %21 = sbr.rel (%p19) target = $region8
    $region5: #{tpu_custom_call.1} parent=1 // loop_body
      %s23 = ssub.s32 %s18, 1
      %s24 = ssub.s32 %s18, 2
      %s37 = sadd.s32 1, %s28
      %p38 = scmp.ge.s32.totalorder %s37, 1
      %s39 = scalar_select %p38, 0, %s37
      %s40 = sadd.s32 1, %s27
      %s41 = scalar_select %p38, %s40, %s27
      %p42 = scmp.ge.s32.totalorder %s41, 1
      %s43 = scalar_select %p42, 0, %s41
      %s44 = sadd.s32 1, %s26
      %s45 = scalar_select %p42, %s44, %s26
      %p46 = scmp.ge.s32.totalorder %s45, 1
      %s47 = scalar_select %p46, 0, %s45
      %s48 = sadd.s32 1, %s25
      %s49 = scalar_select %p46, %s48, %s25
      %p50 = scmp.ge.s32.totalorder %s49, 2
      %s51 = scalar_select %p50, 0, %s49
      %s52 = ssub.s32 %s25, %s51
      %s53 = ssub.s32 %s27, %s43
      %s54 = sor.u32 %s52, %s53
      %s55 = ssub.s32 %s26, %s47
      %s56 = sor.u32 %s54, %s55
      %p57 = scmp.eq.s32.totalorder %s56, 0
      %s59 = sadd.s32 %s58, 1
      %s60 = scalar_select %p57, %s58, %s59
      %p63 = pneg %p57
      %p64 = scmp.eq.s32.totalorder %s18, 1
      %p65 = por %p63, %p64
      %p66 = scmp.ne.s32.totalorder %s58, %s61
      %p67 = scmp.eq.s32.totalorder %s18, 0
      %p68 = por %p66, %p67
      %p69 = scmp.ne.s32.totalorder %s58, %s61
      %p70 = scmp.eq.s32.totalorder %s23, 1
      %p71 = por %p69, %p70
      %p72 = scmp.ne.s32.totalorder %s61, %s62
      %p73 = scmp.eq.s32.totalorder %s23, 0
      %p74 = por %p72, %p73
      %p75 = scmp.ne.s32.totalorder %s61, %s62
      %p76 = scmp.eq.s32.totalorder %s24, 1
      %p77 = por %p75, %p76
      %p79 = scmp.ne.s32.totalorder %s62, %s78
      %p80 = scmp.eq.s32.totalorder %s24, 0
      %p81 = por %p79, %p80
      %s82 = ssub.s32 %s25, %s51
      %s83 = ssub.s32 %s26, %s47
      %s84 = sor.u32 %s82, %s83
      %s85 = ssub.s32 %s28, %s39
      %s86 = sor.u32 %s84, %s85
      %p87 = scmp.eq.s32.totalorder %s86, 0
      %s89 = sadd.s32 %s88, 1
      %s90 = scalar_select %p87, %s88, %s89
      %p93 = pneg %p87
      %p94 = scmp.eq.s32.totalorder %s18, 1
      %p95 = por %p93, %p94
      %p96 = scmp.ne.s32.totalorder %s88, %s91
      %p97 = scmp.eq.s32.totalorder %s18, 0
      %p98 = por %p96, %p97
      %p99 = scmp.ne.s32.totalorder %s88, %s91
      %p100 = scmp.eq.s32.totalorder %s23, 1
      %p101 = por %p99, %p100
      %p102 = scmp.ne.s32.totalorder %s91, %s92
      %p103 = scmp.eq.s32.totalorder %s23, 0
      %p104 = por %p102, %p103
      %p105 = scmp.ne.s32.totalorder %s91, %s92
      %p106 = scmp.eq.s32.totalorder %s24, 1
      %p107 = por %p105, %p106
      %p109 = scmp.ne.s32.totalorder %s92, %s108
      %p110 = scmp.eq.s32.totalorder %s24, 0
      %p111 = por %p109, %p110
      %s112 = ssub.s32 %s25, %s51
      %s113 = ssub.s32 %s26, %s47
      %s114 = sor.u32 %s112, %s113
      %s115 = ssub.s32 %s28, %s39
      %s116 = sor.u32 %s114, %s115
      %p117 = scmp.eq.s32.totalorder %s116, 0
      %s119 = sadd.s32 %s118, 1
      %s120 = scalar_select %p117, %s118, %s119
      %p123 = pneg %p117
      %p124 = scmp.eq.s32.totalorder %s18, 1
      %p125 = por %p123, %p124
      %p126 = scmp.ne.s32.totalorder %s118, %s121
      %p127 = scmp.eq.s32.totalorder %s18, 0
      %p128 = por %p126, %p127
      %p129 = scmp.ne.s32.totalorder %s118, %s121
      %p130 = scmp.eq.s32.totalorder %s23, 1
      %p131 = por %p129, %p130
      %p132 = scmp.ne.s32.totalorder %s121, %s122
      %p133 = scmp.eq.s32.totalorder %s23, 0
      %p134 = por %p132, %p133
      %p135 = scmp.ne.s32.totalorder %s121, %s122
      %p136 = scmp.eq.s32.totalorder %s24, 1
      %p137 = por %p135, %p136
      %p139 = scmp.ne.s32.totalorder %s122, %s138
      %p140 = scmp.eq.s32.totalorder %s24, 0
      %p141 = por %p139, %p140
      %s142 = ssub.s32 %s25, %s51
      %s143 = ssub.s32 %s27, %s43
      %s144 = sor.u32 %s142, %s143
      %s145 = ssub.s32 %s26, %s47
      %s146 = sor.u32 %s144, %s145
      %p147 = scmp.eq.s32.totalorder %s146, 0
      %s149 = sadd.s32 %s148, 1
      %s150 = scalar_select %p147, %s148, %s149
      %p153 = pneg %p147
      %p154 = scmp.eq.s32.totalorder %s18, 1
      %p155 = por %p153, %p154
      %p156 = scmp.ne.s32.totalorder %s148, %s151
      %p157 = scmp.eq.s32.totalorder %s18, 0
      %p158 = por %p156, %p157
      %p159 = scmp.ne.s32.totalorder %s148, %s151
      %p160 = scmp.eq.s32.totalorder %s23, 1
      %p161 = por %p159, %p160
      %p162 = scmp.ne.s32.totalorder %s151, %s152
      %p163 = scmp.eq.s32.totalorder %s23, 0
      %p164 = por %p162, %p163
      %p165 = scmp.ne.s32.totalorder %s151, %s152
      %p166 = scmp.eq.s32.totalorder %s24, 1
      %p167 = por %p165, %p166
      %p169 = scmp.ne.s32.totalorder %s152, %s168
      %p170 = scmp.eq.s32.totalorder %s24, 0
      %p171 = por %p169, %p170
      %p172 = scmp.le.s32.totalorder 1, %s18
      %p173 = scmp.lt.s32.totalorder %s18, 3
      %p174 = pnand %p172, %p173
      %p175 = pneg %p174
      // Predicated region
      $region9: #{tpu_custom_call.1} parent=5 // pred_check
        _
      $region10: #{tpu_custom_call.1} parent=5 // pred_check_branch
        %177 = sbr.rel (%p174) target = $region12
      $region11: #{tpu_custom_call.1} parent=5 // pred_region
        %s178 = ssub.s32 %s18, 1
      $region12: #{tpu_custom_call.1} parent=5 // pred_fallthru
        _
      %p179 = scmp.lt.s32.totalorder %s18, 2
      // Predicated region
      $region13: #{tpu_custom_call.1} parent=5 // pred_check
        %p180 = pneg %p179
      $region14: #{tpu_custom_call.1} parent=5 // pred_check_branch
        %182 = sbr.rel (%p180) target = $region16
      $region15: #{tpu_custom_call.1} parent=5 // pred_region
        // Predicated region
        $region17: #{tpu_custom_call.1} parent=15 // pred_check
          %p183 = pneg %p68
        $region18: #{tpu_custom_call.1} parent=15 // pred_check_branch
          %185 = sbr.rel (%p183) target = $region20
        $region19: #{tpu_custom_call.1} parent=15 // pred_region
          %s186 = sand.u32 %s58, 1
          %s187 = scalar_lea.sflag [#allocation7], %s186
          %s188 = sand.u32 %s58, 1
          %s189 = smul.addr %s188, 8
          %s190 = scalar_lea.vmem [#allocation6], %s189
          %s191 = smul.u32 2, %s27
          %s193 = ssub.s32 128, 128
          %194 = vsyncadd %s187, %s193
          %s195 = sadd.s32 %s26, %s191
          %s196 = smul.addr %s25, 2
          %s197 = sadd.s32 %s195, %s196
          %s198 = smul.addr %s197, 64
          %s199 = scalar_lea.hbm %s0, %s198
          %s200 = sshll.u32 %s190, 4
          %s201 = int_to_ptr.vmem [resolvable:$true] %s200
          %206 = dma.hbm_to_vmem [thread:$0]  %s199, 128, %s201, %s187, 64, 64, 4
        $region20: #{tpu_custom_call.1} parent=15 // pred_fallthru
          _
        // Predicated region
        $region21: #{tpu_custom_call.1} parent=15 // pred_check
          %p207 = pneg %p98
        $region22: #{tpu_custom_call.1} parent=15 // pred_check_branch
          %209 = sbr.rel (%p207) target = $region24
        $region23: #{tpu_custom_call.1} parent=15 // pred_region
          %s210 = sand.u32 %s18, 1
          %s211 = scalar_lea.sflag [#allocation10], %s210
          %s212 = sand.u32 %s88, 1
          %s213 = smul.addr %s212, 16
          %s214 = scalar_lea.vmem [#allocation9], %s213
          %s215 = smul.u32 4, %s28
          %s217 = ssub.s32 256, 256
          %218 = vsyncadd %s211, %s217
          %s219 = smul.addr %s26, 4
          %s220 = sadd.s32 %s215, %s219
          %s221 = smul.addr %s25, 4
          %s222 = sadd.s32 %s220, %s221
          %s223 = smul.addr %s222, 64
          %s224 = scalar_lea.hbm %s1, %s223
          %s225 = sshll.u32 %s214, 4
          %s226 = int_to_ptr.vmem [resolvable:$true] %s225
          %231 = dma.hbm_to_vmem [thread:$0]  %s224, 256, %s226, %s211, 64, 64, 4
        $region24: #{tpu_custom_call.1} parent=15 // pred_fallthru
          _
        // Predicated region
        $region25: #{tpu_custom_call.1} parent=15 // pred_check
          %p232 = pneg %p128
        $region26: #{tpu_custom_call.1} parent=15 // pred_check_branch
          %234 = sbr.rel (%p232) target = $region28
        $region27: #{tpu_custom_call.1} parent=15 // pred_region
          %s235 = sand.u32 %s18, 1
          %s236 = scalar_lea.sflag [#allocation10], %s235
          %s237 = sand.u32 %s118, 1
          %s238 = smul.addr %s237, 16
          %s239 = scalar_lea.vmem [#allocation11], %s238
          %s240 = smul.u32 4, %s28
          %s242 = ssub.s32 256, 256
          %243 = vsyncadd %s236, %s242
          %s244 = smul.addr %s26, 4
          %s245 = sadd.s32 %s240, %s244
          %s246 = smul.addr %s25, 4
          %s247 = sadd.s32 %s245, %s246
          %s248 = smul.addr %s247, 64
          %s249 = scalar_lea.hbm %s2, %s248
          %s250 = sshll.u32 %s239, 4
          %s251 = int_to_ptr.vmem [resolvable:$true] %s250
          %256 = dma.hbm_to_vmem [thread:$0]  %s249, 256, %s251, %s236, 64, 64, 4
        $region28: #{tpu_custom_call.1} parent=15 // pred_fallthru
          _
      $region16: #{tpu_custom_call.1} parent=5 // pred_fallthru
        _
      %p257 = scmp.le.s32.totalorder 1, %s18
      %p258 = scmp.lt.s32.totalorder %s18, 3
      %p259 = pnand %p257, %p258
      %p260 = pneg %p259
      // Predicated region
      $region29: #{tpu_custom_call.1} parent=5 // pred_check
        _
      $region30: #{tpu_custom_call.1} parent=5 // pred_check_branch
        %262 = sbr.rel (%p259) target = $region32
      $region31: #{tpu_custom_call.1} parent=5 // pred_region
        %s263 = ssub.s32 %s18, 1
        %s264 = sand.u32 %s61, 1
        %s265 = scalar_lea.sflag [#allocation7], %s264
        %s266 = sand.u32 %s61, 1
        %s267 = smul.addr %s266, 8
        %s268 = scalar_lea.vmem [#allocation6], %s267
        // Predicated region
        $region33: #{tpu_custom_call.1} parent=31 // pred_check
          %p269 = pneg %p74
        $region34: #{tpu_custom_call.1} parent=31 // pred_check_branch
          %271 = sbr.rel (%p269) target = $region36
        $region35: #{tpu_custom_call.1} parent=31 // pred_region
          %272 = dma.done %s265, 128
        $region36: #{tpu_custom_call.1} parent=31 // pred_fallthru
          _
        %s273 = sand.u32 %s23, 1
        %s274 = scalar_lea.sflag [#allocation10], %s273
        %s275 = sand.u32 %s91, 1
        %s276 = smul.addr %s275, 16
        %s277 = scalar_lea.vmem [#allocation9], %s276
        // Predicated region
        $region37: #{tpu_custom_call.1} parent=31 // pred_check
          %p278 = pneg %p104
        $region38: #{tpu_custom_call.1} parent=31 // pred_check_branch
          %280 = sbr.rel (%p278) target = $region40
        $region39: #{tpu_custom_call.1} parent=31 // pred_region
          %281 = dma.done %s274, 256
        $region40: #{tpu_custom_call.1} parent=31 // pred_fallthru
          _
        %s282 = sand.u32 %s23, 1
        %s283 = scalar_lea.sflag [#allocation10], %s282
        %s284 = sand.u32 %s121, 1
        %s285 = smul.addr %s284, 16
        %s286 = scalar_lea.vmem [#allocation11], %s285
        // Predicated region
        $region41: #{tpu_custom_call.1} parent=31 // pred_check
          %p287 = pneg %p134
        $region42: #{tpu_custom_call.1} parent=31 // pred_check_branch
          %289 = sbr.rel (%p287) target = $region44
        $region43: #{tpu_custom_call.1} parent=31 // pred_region
          %290 = dma.done %s283, 256
        $region44: #{tpu_custom_call.1} parent=31 // pred_fallthru
          _
        %s291 = sand.u32 %s61, 1
        %s292 = scalar_lea.sflag [#allocation7], %s291
        %s293 = sand.u32 %s61, 1
        %s294 = smul.addr %s293, 8
        %s295 = scalar_lea.vmem [#allocation6], %s294
        %p296 = pneg %p74
        %p297 = pneg %p71
        %s298 = sand.u32 %s23, 1
        %s299 = scalar_lea.sflag [#allocation10], %s298
        %s300 = sand.u32 %s91, 1
        %s301 = smul.addr %s300, 16
        %s302 = scalar_lea.vmem [#allocation9], %s301
        %p303 = pneg %p104
        %p304 = pneg %p101
        %s305 = sand.u32 %s23, 1
        %s306 = scalar_lea.sflag [#allocation10], %s305
        %s307 = sand.u32 %s121, 1
        %s308 = smul.addr %s307, 16
        %s309 = scalar_lea.vmem [#allocation11], %s308
        %p310 = pneg %p134
        %p311 = pneg %p131
        %p312 = pneg %p164
        %p313 = pneg %p161
        %s314 = sand.u32 %s151, 1
        %s315 = scalar_lea.sflag [#allocation8], %s314
        %s316 = sand.u32 %s151, 1
        %s317 = smul.addr %s316, 16
        %s318 = scalar_lea.vmem [#allocation12], %s317
        %s319 = smul.u32 2, %s31
        %s320 = smul.u32 4, %s32
        %s321 = smul.u32 4, %s32
        %s322 = smul.u32 2, %s31
        %p324 = scmp.eq.s32.totalorder %s32, 0
        // Predicated region
        $region45: #{tpu_custom_call.1} parent=31 // pred_check
          %p325 = pneg %p324
        $region46: #{tpu_custom_call.1} parent=31 // pred_check_branch
          %327 = sbr.rel (%p325) target = $region48
        $region47: #{tpu_custom_call.1} parent=31 // pred_region
          %v328 = vld [vmem:[%s268] sm:$0xf]
          %v329 = vld [vmem:[%s268 + $0x4] sm:$0xf]
          %v330 = vunpack.c.l.bf16 %v328
          %v331 = vunpack.c.l.bf16 %v329
          %v332 = vmul.f32 %v330, 0.17677669
          %v333 = vmul.f32 %v331, 0.17677669
          %v334 = vpack.c.bf16 %v333, %v332
          %vm335 = vcmask 523264
          %336 = vst.msk [vmem:[#allocation2] sm:$0xff] %vm335, %v334
          %vm337 = vcmask 7168
          %338 = vst.msk [vmem:[#allocation3] sm:$0xff] %vm337, -inf
          %339 = vst.msk [vmem:[#allocation3 + $0x8] sm:$0xff] %vm337, -inf
          %340 = vst.msk [vmem:[#allocation3 + $0x10] sm:$0xff] %vm337, -inf
          %341 = vst.msk [vmem:[#allocation3 + $0x18] sm:$0xff] %vm337, -inf
          %342 = vst.msk [vmem:[#allocation4] sm:$0xff] %vm337, 0.0
          %343 = vst.msk [vmem:[#allocation4 + $0x8] sm:$0xff] %vm337, 0.0
          %344 = vst.msk [vmem:[#allocation4 + $0x10] sm:$0xff] %vm337, 0.0
          %345 = vst.msk [vmem:[#allocation4 + $0x18] sm:$0xff] %vm337, 0.0
          %vm346 = vcmask 261120
          %347 = vst.msk [vmem:[#allocation5] sm:$0xff] %vm346, 0.0
          %348 = vst.msk [vmem:[#allocation5 + $0x8] sm:$0xff] %vm346, 0.0
          %349 = vst.msk [vmem:[#allocation5 + $0x10] sm:$0xff] %vm346, 0.0
          %350 = vst.msk [vmem:[#allocation5 + $0x18] sm:$0xff] %vm346, 0.0
        $region48: #{tpu_custom_call.1} parent=31 // pred_fallthru
          _
        %v351 = vld [vmem:[%s277] sm:$0xf]
        %v352 = vld [vmem:[%s277 + $0x4] sm:$0xf]
        %v353 = vld [vmem:[%s277 + $0x8] sm:$0xf]
        %v354 = vld [vmem:[%s277 + $0xc] sm:$0xf]
        %v355 = vld [vmem:[%s286] sm:$0xf]
        %v356 = vld [vmem:[%s286 + $0x4] sm:$0xf]
        %v357 = vld [vmem:[%s286 + $0x8] sm:$0xf]
        %v358 = vld [vmem:[%s286 + $0xc] sm:$0xf]
        %v359 = vld [vmem:[#allocation2] sm:$0xff]
        %v364 = vunpack.c.l.b16 %v351
        %v365 = vunpack.c.l.b16 %v352
        %v366 = vunpack.c.l.b16 %v353
        %v367 = vunpack.c.l.b16 %v354
        %v368 = vpack.c.b16 %v365, %v364
        %v369 = vpack.c.b16 %v367, %v366
        %vm370 = vcmask 261120
        %v372 = vsel %vm370, %v359, 0
        %v375 = vsel %vm370, %v368, 0
        %v378 = vsel %vm370, %v369, 0
        %380 = vmatprep.subr.bf16.mxu0 0
        %381 = vmatpush1.bf16.xpose.msra.mxu0 %v375
        %382 = vmatprep.subr.bf16.mxu0 0
        %383 = vmatpush1.bf16.xpose.msra.mxu0 %v378
        %384 = vmatprep.subr.bf16.mxu0 0
        %385 = vmatpush1.bf16.xpose.msra.mxu0 0
        %386 = vmatprep.subr.bf16.mxu0 0
        %387 = vmatpush1.bf16.xpose.msra.mxu0 0
        %388 = vmatprep.subr.bf16.mxu0 0
        %389 = vmatpush1.bf16.xpose.msra.mxu0 0
        %390 = vmatprep.subr.bf16.mxu0 0
        %391 = vmatpush1.bf16.xpose.msra.mxu0 0
        %392 = vmatprep.subr.bf16.mxu0 0
        %393 = vmatpush1.bf16.xpose.msra.mxu0 0
        %394 = vmatprep.subr.bf16.mxu0 0
        %395 = vmatpush1.bf16.xpose.msra.mxu0 0
        %396 = vmatprep.subr.bf16.mxu0 0
        %397 = vmatpush1.bf16.xpose.msra.mxu0 0
        %398 = vmatprep.subr.bf16.mxu0 0
        %399 = vmatpush1.bf16.xpose.msra.mxu0 0
        %400 = vmatprep.subr.bf16.mxu0 0
        %401 = vmatpush1.bf16.xpose.msra.mxu0 0
        %402 = vmatprep.subr.bf16.mxu0 0
        %403 = vmatpush1.bf16.xpose.msra.mxu0 0
        %404 = vmatprep.subr.bf16.mxu0 0
        %405 = vmatpush1.bf16.xpose.msra.mxu0 0
        %406 = vmatprep.subr.bf16.mxu0 0
        %407 = vmatpush1.bf16.xpose.msra.mxu0 0
        %408 = vmatprep.subr.bf16.mxu0 0
        %409 = vmatpush1.bf16.xpose.msra.mxu0 0
        %410 = vmatprep.subr.bf16.mxu0 0
        %411 = vmatpush1.bf16.xpose.msra.mxu0 0
        %412 = vmatprep.mubr.bf16.mxu0 0
        %413 = vmatmul.mubr.bf16.gmra.mrb[0].mxu0 %v372
        %v414 = vpop.f32.mrb[0].mxu0
        %v415 = vadd.f32 0.0, %v414
        %v416 = vpop.f32.mrb[0].mxu0
        %v417 = vpop.f32.mrb[0].mxu0
        %v418 = vadd.f32 0.0, %v417
        %v419 = vpop.f32.mrb[0].mxu0
        %420 = vdwg.mxu0
        %v421 = vld [vmem:[#allocation3] sm:$0xff]
        %v422 = vld [vmem:[#allocation3 + $0x8] sm:$0xff]
        %v423 = vsel %vm370, %v415, -inf
        %424 = vmax.xlane.f32.xlu0 %v423
        %v425 = vpop.xlane.xlu0 %424
        %v426 = vsel %vm370, %v418, -inf
        %427 = vmax.xlane.f32.xlu0 %v426
        %v428 = vpop.xlane.xlu0 %427
        %v429 = vmax.f32 %v421, %v425
        %v430 = vmax.f32 %v422, %v428
        %v431 = vsub.f32 %v421, %v429
        %v432 = vsub.f32 %v422, %v430
        %v433 = vmul.f32 %v431, 1.442695
        %v434 = vpow.pop %v433
        %v435 = vmul.f32 %v432, 1.442695
        %v436 = vpow.pop %v435
        %438 = vset.pattern.permute.xlu0 0
        %439 = vperm.xlu0 %438, %v429
        %v440 = vpop.permute.xlu0 %439
        %443 = vset.pattern.permute.xlu0 0
        %444 = vperm.xlu0 %443, %v430
        %v445 = vpop.permute.xlu0 %444
        %v447 = vsub.f32 %v415, %v440
        %v448 = vsub.f32 %v418, %v445
        %v449 = vmul.f32 %v447, 1.442695
        %v450 = vpow.pop %v449
        %v451 = vmul.f32 %v448, 1.442695
        %v452 = vpow.pop %v451
        %v453 = vld [vmem:[#allocation4] sm:$0xff]
        %v454 = vld [vmem:[#allocation4 + $0x8] sm:$0xff]
        %v455 = vmul.f32 %v434, %v453
        %v456 = vmul.f32 %v436, %v454
        %v457 = vsel %vm370, %v450, 0.0
        %458 = vadd.xlane.f32.xlu0 %v457
        %v459 = vpop.xlane.xlu0 %458
        %v460 = vsel %vm370, %v452, 0.0
        %461 = vadd.xlane.f32.xlu0 %v460
        %v462 = vpop.xlane.xlu0 %461
        %v463 = vadd.f32 %v455, %v459
        %v464 = vadd.f32 %v456, %v462
        %vm465 = vcmask 7168
        %466 = vst.msk [vmem:[#allocation4] sm:$0xff] %vm465, %v463
        %467 = vst.msk [vmem:[#allocation4 + $0x8] sm:$0xff] %vm465, %v464
        %v468 = vld [vmem:[#allocation5] sm:$0xff]
        %v469 = vld [vmem:[#allocation5 + $0x8] sm:$0xff]
        %471 = vset.pattern.permute.xlu0 0
        %472 = vperm.xlu0 %471, %v434
        %v473 = vpop.permute.xlu0 %472
        %476 = vset.pattern.permute.xlu0 0
        %477 = vperm.xlu0 %476, %v436
        %v478 = vpop.permute.xlu0 %477
        %v480 = vmul.f32 %v473, %v468
        %v481 = vmul.f32 %v478, %v469
        %v482 = vpack.c.bf16 %v452, %v450
        %v487 = vunpack.c.l.b16 %v355
        %v488 = vunpack.c.l.b16 %v356
        %v489 = vunpack.c.l.b16 %v357
        %v490 = vunpack.c.l.b16 %v358
        %v491 = vpack.c.b16 %v488, %v487
        %v492 = vpack.c.b16 %v490, %v489
        %v496 = vsel %vm370, %v482, 0
        %498 = vmatprep.subr.bf16.mxu0 0
        %499 = vmatpush1.bf16.msra.mxu0 %v491
        %500 = vmatprep.subr.bf16.mxu0 0
        %501 = vmatpush1.bf16.msra.mxu0 %v492
        %502 = vmatprep.subr.bf16.mxu0 0
        %503 = vmatpush1.bf16.msra.mxu0 0
        %504 = vmatprep.subr.bf16.mxu0 0
        %505 = vmatpush1.bf16.msra.mxu0 0
        %506 = vmatprep.subr.bf16.mxu0 0
        %507 = vmatpush1.bf16.msra.mxu0 0
        %508 = vmatprep.subr.bf16.mxu0 0
        %509 = vmatpush1.bf16.msra.mxu0 0
        %510 = vmatprep.subr.bf16.mxu0 0
        %511 = vmatpush1.bf16.msra.mxu0 0
        %512 = vmatprep.subr.bf16.mxu0 0
        %513 = vmatpush1.bf16.msra.mxu0 0
        %514 = vmatprep.subr.bf16.mxu0 0
        %515 = vmatpush1.bf16.msra.mxu0 0
        %516 = vmatprep.subr.bf16.mxu0 0
        %517 = vmatpush1.bf16.msra.mxu0 0
        %518 = vmatprep.subr.bf16.mxu0 0
        %519 = vmatpush1.bf16.msra.mxu0 0
        %520 = vmatprep.subr.bf16.mxu0 0
        %521 = vmatpush1.bf16.msra.mxu0 0
        %522 = vmatprep.subr.bf16.mxu0 0
        %523 = vmatpush1.bf16.msra.mxu0 0
        %524 = vmatprep.subr.bf16.mxu0 0
        %525 = vmatpush1.bf16.msra.mxu0 0
        %526 = vmatprep.subr.bf16.mxu0 0
        %527 = vmatpush1.bf16.msra.mxu0 0
        %528 = vmatprep.subr.bf16.mxu0 0
        %529 = vmatpush1.bf16.msra.mxu0 0
        %530 = vmatprep.mubr.bf16.mxu0 0
        %531 = vmatmul.mubr.bf16.gmra.mrb[0].mxu0 %v496
        %v532 = vpop.f32.mrb[0].mxu0
        %v533 = vadd.f32 0.0, %v532
        %v534 = vpop.f32.mrb[0].mxu0
        %v535 = vpop.f32.mrb[0].mxu0
        %v536 = vadd.f32 0.0, %v535
        %v537 = vpop.f32.mrb[0].mxu0
        %538 = vdwg.mxu0
        %v539 = vadd.f32 %v480, %v533
        %v540 = vadd.f32 %v481, %v536
        %541 = vst.msk [vmem:[#allocation5] sm:$0xff] %vm370, %v539
        %542 = vst.msk [vmem:[#allocation5 + $0x8] sm:$0xff] %vm370, %v540
        %543 = vst.msk [vmem:[#allocation3] sm:$0xff] %vm465, %v429
        %544 = vst.msk [vmem:[#allocation3 + $0x8] sm:$0xff] %vm465, %v430
        %v545 = vld [vmem:[#allocation2] sm:$0xff]
        %547 = vrot.lane.b32.xlu0 %v545, 96
        %v548 = vpop.permute.xlu0 %547
        %549 = vrot.lane.b32.xlu0 %v368, 96
        %v550 = vpop.permute.xlu0 %549
        %551 = vrot.lane.b32.xlu0 %v369, 96
        %v552 = vpop.permute.xlu0 %551
        %v554 = vsel %vm370, %v548, 0
        %v557 = vsel %vm370, %v550, 0
        %v560 = vsel %vm370, %v552, 0
        %562 = vmatprep.subr.bf16.mxu0 0
        %563 = vmatpush1.bf16.xpose.msra.mxu0 %v557
        %564 = vmatprep.subr.bf16.mxu0 0
        %565 = vmatpush1.bf16.xpose.msra.mxu0 %v560
        %566 = vmatprep.subr.bf16.mxu0 0
        %567 = vmatpush1.bf16.xpose.msra.mxu0 0
        %568 = vmatprep.subr.bf16.mxu0 0
        %569 = vmatpush1.bf16.xpose.msra.mxu0 0
        %570 = vmatprep.subr.bf16.mxu0 0
        %571 = vmatpush1.bf16.xpose.msra.mxu0 0
        %572 = vmatprep.subr.bf16.mxu0 0
        %573 = vmatpush1.bf16.xpose.msra.mxu0 0
        %574 = vmatprep.subr.bf16.mxu0 0
        %575 = vmatpush1.bf16.xpose.msra.mxu0 0
        %576 = vmatprep.subr.bf16.mxu0 0
        %577 = vmatpush1.bf16.xpose.msra.mxu0 0
        %578 = vmatprep.subr.bf16.mxu0 0
        %579 = vmatpush1.bf16.xpose.msra.mxu0 0
        %580 = vmatprep.subr.bf16.mxu0 0
        %581 = vmatpush1.bf16.xpose.msra.mxu0 0
        %582 = vmatprep.subr.bf16.mxu0 0
        %583 = vmatpush1.bf16.xpose.msra.mxu0 0
        %584 = vmatprep.subr.bf16.mxu0 0
        %585 = vmatpush1.bf16.xpose.msra.mxu0 0
        %586 = vmatprep.subr.bf16.mxu0 0
        %587 = vmatpush1.bf16.xpose.msra.mxu0 0
        %588 = vmatprep.subr.bf16.mxu0 0
        %589 = vmatpush1.bf16.xpose.msra.mxu0 0
        %590 = vmatprep.subr.bf16.mxu0 0
        %591 = vmatpush1.bf16.xpose.msra.mxu0 0
        %592 = vmatprep.subr.bf16.mxu0 0
        %593 = vmatpush1.bf16.xpose.msra.mxu0 0
        %594 = vmatprep.mubr.bf16.mxu0 0
        %595 = vmatmul.mubr.bf16.gmra.mrb[0].mxu0 %v554
        %v596 = vpop.f32.mrb[0].mxu0
        %v597 = vadd.f32 0.0, %v596
        %v598 = vpop.f32.mrb[0].mxu0
        %v599 = vpop.f32.mrb[0].mxu0
        %v600 = vadd.f32 0.0, %v599
        %v601 = vpop.f32.mrb[0].mxu0
        %602 = vdwg.mxu0
        %s603 = scalar_lea.vmem [#allocation3], 16
        %v604 = vld [vmem:[%s603] sm:$0xff]
        %v605 = vld [vmem:[%s603 + $0x8] sm:$0xff]
        %v606 = vsel %vm370, %v597, -inf
        %607 = vmax.xlane.f32.xlu0 %v606
        %v608 = vpop.xlane.xlu0 %607
        %v609 = vsel %vm370, %v600, -inf
        %610 = vmax.xlane.f32.xlu0 %v609
        %v611 = vpop.xlane.xlu0 %610
        %v612 = vmax.f32 %v604, %v608
        %v613 = vmax.f32 %v605, %v611
        %v614 = vsub.f32 %v604, %v612
        %v615 = vsub.f32 %v605, %v613
        %v616 = vmul.f32 %v614, 1.442695
        %v617 = vpow.pop %v616
        %v618 = vmul.f32 %v615, 1.442695
        %v619 = vpow.pop %v618
        %621 = vset.pattern.permute.xlu0 0
        %622 = vperm.xlu0 %621, %v612
        %v623 = vpop.permute.xlu0 %622
        %626 = vset.pattern.permute.xlu0 0
        %627 = vperm.xlu0 %626, %v613
        %v628 = vpop.permute.xlu0 %627
        %v630 = vsub.f32 %v597, %v623
        %v631 = vsub.f32 %v600, %v628
        %v632 = vmul.f32 %v630, 1.442695
        %v633 = vpow.pop %v632
        %v634 = vmul.f32 %v631, 1.442695
        %v635 = vpow.pop %v634
        %s636 = scalar_lea.vmem [#allocation4], 16
        %v637 = vld [vmem:[%s636] sm:$0xff]
        %v638 = vld [vmem:[%s636 + $0x8] sm:$0xff]
        %v639 = vmul.f32 %v617, %v637
        %v640 = vmul.f32 %v619, %v638
        %v641 = vsel %vm370, %v633, 0.0
        %642 = vadd.xlane.f32.xlu0 %v641
        %v643 = vpop.xlane.xlu0 %642
        %v644 = vsel %vm370, %v635, 0.0
        %645 = vadd.xlane.f32.xlu0 %v644
        %v646 = vpop.xlane.xlu0 %645
        %v647 = vadd.f32 %v639, %v643
        %v648 = vadd.f32 %v640, %v646
        %649 = vst.msk [vmem:[%s636] sm:$0xff] %vm465, %v647
        %650 = vst.msk [vmem:[%s636 + $0x8] sm:$0xff] %vm465, %v648
        %s651 = scalar_lea.vmem [#allocation5], 16
        %v652 = vld [vmem:[%s651] sm:$0xff]
        %v653 = vld [vmem:[%s651 + $0x8] sm:$0xff]
        %655 = vset.pattern.permute.xlu0 0
        %656 = vperm.xlu0 %655, %v617
        %v657 = vpop.permute.xlu0 %656
        %660 = vset.pattern.permute.xlu0 0
        %661 = vperm.xlu0 %660, %v619
        %v662 = vpop.permute.xlu0 %661
        %v664 = vmul.f32 %v657, %v652
        %v665 = vmul.f32 %v662, %v653
        %v666 = vpack.c.bf16 %v635, %v633
        %667 = vrot.lane.b32.xlu0 %v491, 96
        %v668 = vpop.permute.xlu0 %667
        %669 = vrot.lane.b32.xlu0 %v492, 96
        %v670 = vpop.permute.xlu0 %669
        %v674 = vsel %vm370, %v666, 0
        %676 = vmatprep.subr.bf16.mxu0 0
        %677 = vmatpush1.bf16.msra.mxu0 %v668
        %678 = vmatprep.subr.bf16.mxu0 0
        %679 = vmatpush1.bf16.msra.mxu0 %v670
        %680 = vmatprep.subr.bf16.mxu0 0
        %681 = vmatpush1.bf16.msra.mxu0 0
        %682 = vmatprep.subr.bf16.mxu0 0
        %683 = vmatpush1.bf16.msra.mxu0 0
        %684 = vmatprep.subr.bf16.mxu0 0
        %685 = vmatpush1.bf16.msra.mxu0 0
        %686 = vmatprep.subr.bf16.mxu0 0
        %687 = vmatpush1.bf16.msra.mxu0 0
        %688 = vmatprep.subr.bf16.mxu0 0
        %689 = vmatpush1.bf16.msra.mxu0 0
        %690 = vmatprep.subr.bf16.mxu0 0
        %691 = vmatpush1.bf16.msra.mxu0 0
        %692 = vmatprep.subr.bf16.mxu0 0
        %693 = vmatpush1.bf16.msra.mxu0 0
        %694 = vmatprep.subr.bf16.mxu0 0
        %695 = vmatpush1.bf16.msra.mxu0 0
        %696 = vmatprep.subr.bf16.mxu0 0
        %697 = vmatpush1.bf16.msra.mxu0 0
        %698 = vmatprep.subr.bf16.mxu0 0
        %699 = vmatpush1.bf16.msra.mxu0 0
        %700 = vmatprep.subr.bf16.mxu0 0
        %701 = vmatpush1.bf16.msra.mxu0 0
        %702 = vmatprep.subr.bf16.mxu0 0
        %703 = vmatpush1.bf16.msra.mxu0 0
        %704 = vmatprep.subr.bf16.mxu0 0
        %705 = vmatpush1.bf16.msra.mxu0 0
        %706 = vmatprep.subr.bf16.mxu0 0
        %707 = vmatpush1.bf16.msra.mxu0 0
        %708 = vmatprep.mubr.bf16.mxu0 0
        %709 = vmatmul.mubr.bf16.gmra.mrb[0].mxu0 %v674
        %v710 = vpop.f32.mrb[0].mxu0
        %v711 = vadd.f32 0.0, %v710
        %v712 = vpop.f32.mrb[0].mxu0
        %v713 = vpop.f32.mrb[0].mxu0
        %v714 = vadd.f32 0.0, %v713
        %v715 = vpop.f32.mrb[0].mxu0
        %716 = vdwg.mxu0
        %v717 = vadd.f32 %v664, %v711
        %v718 = vadd.f32 %v665, %v714
        %719 = vst.msk [vmem:[%s651] sm:$0xff] %vm370, %v717
        %720 = vst.msk [vmem:[%s651 + $0x8] sm:$0xff] %vm370, %v718
        %721 = vst.msk [vmem:[%s603] sm:$0xff] %vm465, %v612
        %722 = vst.msk [vmem:[%s603 + $0x8] sm:$0xff] %vm465, %v613
        // Predicated region
        $region49: #{tpu_custom_call.1} parent=31 // pred_check
          %p723 = pneg %p324
        $region50: #{tpu_custom_call.1} parent=31 // pred_check_branch
          %725 = sbr.rel (%p723) target = $region52
        $region51: #{tpu_custom_call.1} parent=31 // pred_region
          %v726 = vld [vmem:[#allocation4] sm:$0xff]
          %v727 = vld [vmem:[#allocation4 + $0x8] sm:$0xff]
          %v728 = vrcp.pop %v726
          %v729 = vrcp.pop %v727
          %v730 = vld [vmem:[#allocation5] sm:$0xff]
          %v731 = vld [vmem:[#allocation5 + $0x8] sm:$0xff]
          %733 = vset.pattern.permute.xlu0 0
          %734 = vperm.xlu0 %733, %v728
          %v735 = vpop.permute.xlu0 %734
          %738 = vset.pattern.permute.xlu0 0
          %739 = vperm.xlu0 %738, %v729
          %v740 = vpop.permute.xlu0 %739
          %v742 = vmul.f32 %v730, %v735
          %v743 = vmul.f32 %v731, %v740
          %744 = vst.msk [vmem:[%s318] sm:$0xff] %vm370, %v742
          %745 = vst.msk [vmem:[%s318 + $0x8] sm:$0xff] %vm370, %v743
          %v746 = vld [vmem:[%s636] sm:$0xff]
          %v747 = vld [vmem:[%s636 + $0x8] sm:$0xff]
          %v748 = vrcp.pop %v746
          %v749 = vrcp.pop %v747
          %v750 = vld [vmem:[%s651] sm:$0xff]
          %v751 = vld [vmem:[%s651 + $0x8] sm:$0xff]
          %753 = vset.pattern.permute.xlu0 0
          %754 = vperm.xlu0 %753, %v748
          %v755 = vpop.permute.xlu0 %754
          %758 = vset.pattern.permute.xlu0 0
          %759 = vperm.xlu0 %758, %v749
          %v760 = vpop.permute.xlu0 %759
          %v762 = vmul.f32 %v750, %v755
          %v763 = vmul.f32 %v751, %v760
          %766 = vrot.lane.b32.xlu0 %v762, 32
          %v767 = vpop.permute.xlu0 %766
          %768 = vrot.lane.b32.xlu0 %v763, 32
          %v769 = vpop.permute.xlu0 %768
          %vm772 = vcmask 523520
          %773 = vst.msk [vmem:[%s318] sm:$0xff] %vm772, %v767
          %774 = vst.msk [vmem:[%s318 + $0x8] sm:$0xff] %vm772, %v769
        $region52: #{tpu_custom_call.1} parent=31 // pred_fallthru
          _
        %s775 = sand.u32 %s151, 1
        %s776 = scalar_lea.sflag [#allocation8], %s775
        %s777 = sand.u32 %s151, 1
        %s778 = smul.addr %s777, 16
        %s779 = scalar_lea.vmem [#allocation12], %s778
        // Predicated region
        $region53: #{tpu_custom_call.1} parent=31 // pred_check
          %p780 = pneg %p161
        $region54: #{tpu_custom_call.1} parent=31 // pred_check_branch
          %782 = sbr.rel (%p780) target = $region56
        $region55: #{tpu_custom_call.1} parent=31 // pred_region
          %s783 = smul.u32 2, %s31
          %s785 = ssub.s32 256, 256
          %786 = vsyncadd %s776, %s785
          %s787 = sadd.s32 %s30, %s783
          %s788 = smul.addr %s29, 2
          %s789 = sadd.s32 %s787, %s788
          %s790 = smul.addr %s789, 128
          %s791 = scalar_lea.hbm %s3, %s790
          %s792 = sshll.u32 %s779, 4
          %s793 = int_to_ptr.vmem [resolvable:$true] %s792
          %798 = dma.vmem_to_hbm [thread:$0]  %s793, 256, %s791, %s776, 128, 128, 8
        $region56: #{tpu_custom_call.1} parent=31 // pred_fallthru
          _
      $region32: #{tpu_custom_call.1} parent=5 // pred_fallthru
        _
      %p799 = scmp.le.s32.totalorder 2, %s18
      // Predicated region
      $region57: #{tpu_custom_call.1} parent=5 // pred_check
        %p800 = pneg %p799
      $region58: #{tpu_custom_call.1} parent=5 // pred_check_branch
        %802 = sbr.rel (%p800) target = $region60
      $region59: #{tpu_custom_call.1} parent=5 // pred_region
        %s803 = ssub.s32 %s18, 2
        // Predicated region
        $region61: #{tpu_custom_call.1} parent=59 // pred_check
          %p804 = pneg %p167
        $region62: #{tpu_custom_call.1} parent=59 // pred_check_branch
          %806 = sbr.rel (%p804) target = $region64
        $region63: #{tpu_custom_call.1} parent=59 // pred_region
          %s807 = sand.u32 %s152, 1
          %s808 = scalar_lea.sflag [#allocation8], %s807
          %s809 = sand.u32 %s152, 1
          %s810 = smul.addr %s809, 16
          %s811 = scalar_lea.vmem [#allocation12], %s810
          %812 = dma.done %s808, 256
        $region64: #{tpu_custom_call.1} parent=59 // pred_fallthru
          _
      $region60: #{tpu_custom_call.1} parent=5 // pred_fallthru
        _
    $region6: #{tpu_custom_call.1} parent=1 // loop_footer
      %s22 = sadd.s32 1, %s18
    $region7: #{tpu_custom_call.1} parent=1 // loop_footer_branch
      %17 = sbr.rel target = $region3
    $region8: #{tpu_custom_call.1} parent=1 // loop_exit
      _
    %813 = vsyncpa [#allocation7], 1
    %s814 = scalar_lea.sflag [#allocation7], 1
    %815 = vsyncpa %s814, 1
    %816 = vsyncpa [#allocation10], 1
    %s817 = scalar_lea.sflag [#allocation10], 1
    %818 = vsyncpa %s817, 1
    %819 = vsyncpa [#allocation8], 1
    %s820 = scalar_lea.sflag [#allocation8], 1
    %821 = vsyncpa %s820, 1

</llo_original>
